<compile_context>
chip_gen: v5e
topology: v5e:2x2
jax: 0.10.0
libtpu: 0.0.40
codegen_flags: <defaults>
</compile_context>

<pallas_src>
import functools

import jax
import jax.numpy as jnp
from jax.experimental import pallas as pl
from jax.experimental.pallas import tpu as pltpu

ACT_DT = jnp.bfloat16          # activations / weights stream through HBM in bf16
LEAKY_SLOPE = 0.2
BN_EPS = 1e-5

_TK_FULL_MAX = 4096
_TM_MAX = 256


def _round_up(x, m):
    return (x + m - 1) // m * m


# ----------------------------------------------------------------------------
# Fused GEMM kernel
#   prologue : per-K-column affine + LeakyReLU on the A tile (previous layer's
#              BatchNorm / activation), computed in f32, cast to bf16 for MXU
#   matmul   : bf16 x bf16 -> f32 accumulator
#   stats    : per-output-column sum / sum-of-squares of the raw accumulator
#              (masked to the valid rows), accumulated across the M grid axis
#   epilogue : optional LeakyReLU on the output (layers with no BatchNorm)
# ----------------------------------------------------------------------------
def _fused_gemm_kernel(scale_ref, shift_ref, slope_ref, a_ref, b_ref,
                       o_ref, sum_ref, sq_ref, acc_ref,
                       *, m_valid, tm, out_slope):
    i = pl.program_id(1)
    k = pl.program_id(2)
    k_last = pl.num_programs(2) - 1

    @pl.when(k == 0)
    def _():
        acc_ref[...] = jnp.zeros_like(acc_ref)

    @pl.when((i == 0) & (k == 0))
    def _():
        sum_ref[...] = jnp.zeros_like(sum_ref)
        sq_ref[...] = jnp.zeros_like(sq_ref)

    a = a_ref[...].astype(jnp.float32)
    a = a * scale_ref[...] + shift_ref[...]
    a = jnp.where(a >= 0, a, a * slope_ref[...])

    acc_ref[...] += jnp.dot(a.astype(jnp.bfloat16), b_ref[...],
                            preferred_element_type=jnp.float32)

    @pl.when(k == k_last)
    def _():
        acc = acc_ref[...]
        rows = jax.lax.broadcasted_iota(jnp.int32, acc.shape, 0) + i * tm
        accv = jnp.where(rows < m_valid, acc, 0.0)
        sum_ref[...] += jnp.sum(accv, axis=0, keepdims=True)
        sq_ref[...] += jnp.sum(accv * accv, axis=0, keepdims=True)
        out = acc
        if out_slope is not None:
            out = jnp.where(out >= 0, out, out * out_slope)
        o_ref[...] = out.astype(o_ref.dtype)


def _pick_tk(K):
    if K <= _TK_FULL_MAX:
        return K, K
    for t in (2048, 1024, 512, 256, 128):
        if K % t == 0:
            return t, K
    return 512, _round_up(K, 512)


def _pick_tn(N):
    if N < 128:
        return N, N           # full-extent block: no N-padding / slicing copies
    for t in (256, 128):
        if N % t == 0:
            return t, N
    return 128, _round_up(N, 128)


def fused_gemm(a, b, col_scale, col_shift, col_slope, *, out_slope=None):
    """Y = leaky(A*scale + shift, slope) @ B with bf16 MXU and f32 accumulation.

    Returns (Y (M,N) bf16, colsum (N,) f32, colsumsq (N,) f32) where the stats
    are taken over the valid M rows of the raw f32 accumulator.
    """
    M, K = a.shape
    K2, N = b.shape
    assert K == K2
    a = a.astype(ACT_DT)
    b = b.astype(ACT_DT)

    tk, Kp = _pick_tk(K)
    tn, Np = _pick_tn(N)
    Mp0 = _round_up(M, 16)
    tm = min(_TM_MAX, Mp0)
    Mp = _round_up(M, tm)

    if Mp > M:
        a = jnp.pad(a, ((0, Mp - M), (0, 0)))
    if Kp > K:
        a = jnp.pad(a, ((0, 0), (0, Kp - K)))
        b = jnp.pad(b, ((0, Kp - K), (0, 0)))
        col_scale = jnp.pad(col_scale, (0, Kp - K), constant_values=1.0)
        col_shift = jnp.pad(col_shift, (0, Kp - K))
        col_slope = jnp.pad(col_slope, (0, Kp - K), constant_values=1.0)
    if Np > N:
        b = jnp.pad(b, ((0, 0), (0, Np - N)))

    scale = col_scale.reshape(1, Kp).astype(jnp.float32)
    shift = col_shift.reshape(1, Kp).astype(jnp.float32)
    slope = col_slope.reshape(1, Kp).astype(jnp.float32)

    kernel = functools.partial(_fused_gemm_kernel, m_valid=M, tm=tm,
                               out_slope=out_slope)
    y, s, q = pl.pallas_call(
        kernel,
        out_shape=(jax.ShapeDtypeStruct((Mp, Np), ACT_DT),
                   jax.ShapeDtypeStruct((1, Np), jnp.float32),
                   jax.ShapeDtypeStruct((1, Np), jnp.float32)),
        grid=(Np // tn, Mp // tm, Kp // tk),
        in_specs=[
            pl.BlockSpec((1, tk), lambda j, i, k: (0, k)),    # scale
            pl.BlockSpec((1, tk), lambda j, i, k: (0, k)),    # shift
            pl.BlockSpec((1, tk), lambda j, i, k: (0, k)),    # slope
            pl.BlockSpec((tm, tk), lambda j, i, k: (i, k)),   # A
            pl.BlockSpec((tk, tn), lambda j, i, k: (k, j)),   # B
        ],
        out_specs=(pl.BlockSpec((tm, tn), lambda j, i, k: (i, j)),
                   pl.BlockSpec((1, tn), lambda j, i, k: (0, j)),
                   pl.BlockSpec((1, tn), lambda j, i, k: (0, j))),
        scratch_shapes=[pltpu.VMEM((tm, tn), jnp.float32)],
        compiler_params=pltpu.CompilerParams(
            dimension_semantics=("parallel", "arbitrary", "arbitrary")),
    )(scale, shift, slope, a, b)
    return y[:M, :N], s[0, :N], q[0, :N]


# ----------------------------------------------------------------------------
# XLA glue: im2col gather, spatial padding, pixel-shuffle (pure data movement)
# ----------------------------------------------------------------------------
def _im2col(xp, kh, kw, stride):
    N, Hp, Wp, C = xp.shape
    Ho = (Hp - kh) // stride + 1
    Wo = (Wp - kw) // stride + 1
    cols = []
    for dy in range(kh):
        for dx in range(kw):
            cols.append(xp[:, dy:dy + (Ho - 1) * stride + 1:stride,
                              dx:dx + (Wo - 1) * stride + 1:stride, :])
    patches = jnp.concatenate(cols, axis=-1).reshape(N * Ho * Wo, kh * kw * C)
    return patches, (N, Ho, Wo)


def _pad_spatial(y, pad, pad_val_c):
    """Spatial pad with a per-channel value (the value the deferred affine
    maps to exactly zero, i.e. the BN batch mean)."""
    if pad == 0:
        return y
    N, H, W, C = y.shape
    canvas = jnp.broadcast_to(pad_val_c.astype(y.dtype).reshape(1, 1, 1, C),
                              (N, H + 2 * pad, W + 2 * pad, C))
    return canvas.at[:, pad:pad + H, pad:pad + W, :].set(y)


# ----------------------------------------------------------------------------
# Deferred activations: a "pre" is (raw bf16 tensor, scale, shift, slope) with
# the pointwise op  leaky(x*scale + shift, slope)  applied lazily inside the
# consumer GEMM's prologue.
# ----------------------------------------------------------------------------
def _identity_pre(y):
    C = y.shape[-1]
    one = jnp.ones((C,), jnp.float32)
    return (y.astype(ACT_DT), one, jnp.zeros((C,), jnp.float32), one)


def _leaky_pre(y):
    C = y.shape[-1]
    one = jnp.ones((C,), jnp.float32)
    return (y.astype(ACT_DT), one, jnp.zeros((C,), jnp.float32),
            jnp.full((C,), LEAKY_SLOPE, jnp.float32))


def _conv_from_pre(pre, wmat, kh, kw, stride, pad, *, out_slope=None):
    y, sc, sh, sl = pre
    pad_val = -sh / sc                         # prologue maps this to exactly 0
    yp = _pad_spatial(y, pad, pad_val)
    patches, (N, Ho, Wo) = _im2col(yp, kh, kw, stride)
    taps = kh * kw
    out, s, q = fused_gemm(patches, wmat,
                           jnp.tile(sc, taps), jnp.tile(sh, taps),
                           jnp.tile(sl, taps), out_slope=out_slope)
    return out.reshape(N, Ho, Wo, wmat.shape[1]), s, q


def _conv_bn_leaky(pre, wmat, gamma, stride):
    """Conv3x3 (pad 1) + BatchNorm(batch stats) + LeakyReLU, activation deferred."""
    yraw, s, q = _conv_from_pre(pre, wmat, 3, 3, stride, 1)
    M = yraw.shape[0] * yraw.shape[1] * yraw.shape[2]
    mean = s / M
    var = jnp.maximum(q / M - mean * mean, 0.0)      # biased var, clamped >= 0
    # keep the mean at bf16 precision so the spatial pad value cancels exactly
    mean_b = mean.astype(ACT_DT).astype(jnp.float32)
    scale = gamma / jnp.sqrt(var + BN_EPS)
    shift = -mean_b * scale                          # BatchNorm beta == 0
    slope = jnp.full_like(scale, LEAKY_SLOPE)
    return (yraw, scale, shift, slope)


def _down(pre, w):
    pre = _conv_bn_leaky(pre, w['w1'], w['g1'], 1)
    pre = _conv_bn_leaky(pre, w['w2'], w['g2'], 1)
    pre = _conv_bn_leaky(pre, w['w3'], w['g3'], 2)
    return pre


def _global_conv(pre, wmat):
    """Conv2d(512, 1024, kernel = whole bottleneck) + fused LeakyReLU epilogue."""
    y, sc, sh, sl = pre
    N, H, W, C = y.shape
    taps = H * W
    patches = y.reshape(N, taps * C)
    z, _, _ = fused_gemm(patches, wmat,
                         jnp.tile(sc, taps), jnp.tile(sh, taps),
                         jnp.tile(sl, taps), out_slope=LEAKY_SLOPE)
    return z.reshape(N, 1, 1, wmat.shape[1])


def _deconv_blockwise(z, wt):
    """ConvTranspose2d(k = stride = s, p = 0): disjoint s x s output blocks."""
    N, Hz, Wz, Cin = z.shape
    Cin2, Cout, s, _ = wt.shape
    a, sc, sh, sl = _identity_pre(z.reshape(N * Hz * Wz, Cin))
    out, _, _ = fused_gemm(a, wt.reshape(Cin, Cout * s * s), sc, sh, sl)
    out = out.reshape(N, Hz, Wz, Cout, s, s)
    return jnp.transpose(out, (0, 1, 4, 2, 5, 3)).reshape(N, Hz * s, Wz * s, Cout)


def _deconv4x4s2_from_pre(pre, wmat):
    """ConvTranspose2d(k=4, s=2, p=1) via sub-pixel phase decomposition:
    a single GEMM over a 3x3 input window with a (9*Cin, 4*Cout) combined
    weight (no zero-dilated input)."""
    y, sc, sh, sl = pre
    pad_val = -sh / sc
    yp = _pad_spatial(y, 1, pad_val)
    patches, (N, Hi, Wi) = _im2col(yp, 3, 3, 1)
    out, _, _ = fused_gemm(patches, wmat,
                           jnp.tile(sc, 9), jnp.tile(sh, 9), jnp.tile(sl, 9))
    Cout = wmat.shape[1] // 4
    out = out.reshape(N, Hi, Wi, 2, 2, Cout)
    return jnp.transpose(out, (0, 1, 3, 2, 4, 5)).reshape(N, 2 * Hi, 2 * Wi, Cout)


def _up(x1_pre, x2_pre, w, *, final):
    y1, s1c, s1h, s1l = x1_pre
    y2, s2c, s2h, s2l = x2_pre
    dy = y2.shape[1] - y1.shape[1]
    dx = y2.shape[2] - y1.shape[2]
    if dy or dx:
        y1 = jnp.pad(y1, ((0, 0), (dy // 2, dy - dy // 2),
                          (dx // 2, dx - dx // 2), (0, 0)))
    cat_pre = (jnp.concatenate([y2, y1], axis=-1),          # torch.cat([x2, x1], 1)
               jnp.concatenate([s2c, s1c]),
               jnp.concatenate([s2h, s1h]),
               jnp.concatenate([s2l, s1l]))
    # Up.conv (3x3, pad 1); its LeakyReLU is deferred into the deconv prologue
    yconv, _, _ = _conv_from_pre(cat_pre, w['wc'], 3, 3, 1, 1)
    ydec = _deconv4x4s2_from_pre(_leaky_pre(yconv), w['wd'])
    # the outer self.lrelu(...) in Hourglass.forward is deferred to the next
    # consumer; up1 (the final output) has no outer activation
    return _identity_pre(ydec) if final else _leaky_pre(ydec)


def hourglass_forward(x_nchw, prm):
    x = jnp.transpose(x_nchw, (0, 2, 3, 1))                 # NHWC
    pre = _identity_pre(x)

    d1 = _down(pre, prm['down1'])
    d2 = _down(d1, prm['down2'])
    d3 = _down(d2, prm['down3'])
    d4 = _down(d3, prm['down4'])
    d5 = _down(d4, prm['down5'])

    z = _global_conv(d5, prm['global_w'])                   # LeakyReLU fused
    up_in = _deconv_blockwise(z, prm['deconv_wt'])

    u5 = _up(_identity_pre(up_in), d5, prm['up5'], final=False)
    u4 = _up(u5, d4, prm['up4'], final=False)
    u3 = _up(u4, d3, prm['up3'], final=False)
    u2 = _up(u3, d2, prm['up2'], final=False)
    u1 = _up(u2, d1, prm['up1'], final=True)

    out = jnp.transpose(u1[0].astype(jnp.float32), (0, 3, 1, 2))
    z_out = jnp.transpose(z.astype(jnp.float32), (0, 3, 1, 2))
    return out, z_out


# ----------------------------------------------------------------------------
# Deterministic parameters (weights_init: conv ~ N(0, 0.02); BN gamma ~ N(1, 0.02),
# beta = 0), stored as bf16 GEMM-ready matrices.
# ----------------------------------------------------------------------------
def make_params(key, *, global_k):
    keys = iter(jax.random.split(key, 128))

    def nrm(shape, std=0.02, mean=0.0):
        return mean + std * jax.random.normal(next(keys), shape, jnp.float32)

    def conv_mat(cout, cin, kh, kw):                       # PyTorch OIHW weight
        w = nrm((cout, cin, kh, kw))
        return jnp.transpose(w, (2, 3, 1, 0)).reshape(kh * kw * cin, cout).astype(ACT_DT)

    def bn_gamma(c):
        return nrm((c,), std=0.02, mean=1.0)

    def down_w(cin, cout):
        return {'w1': conv_mat(cin, cin, 3, 3), 'g1': bn_gamma(cin),
                'w2': conv_mat(cin, cin, 3, 3), 'g2': bn_gamma(cin),
                'w3': conv_mat(cout, cin, 3, 3), 'g3': bn_gamma(cout)}

    def deconv4_subpixel_mat(cin, cout):
        wt = nrm((cin, cout, 4, 4))                        # ConvTranspose2d layout
        wc = jnp.zeros((3, 3, cin, 2, 2, cout), jnp.float32)
        # phase decomposition of k=4, s=2, p=1: (phase, 3x3 window offset, tap)
        pairs = ((0, 0, 3), (0, 1, 1), (1, 1, 2), (1, 2, 0))
        for (py, dy, ky) in pairs:
            for (px, dx, kx) in pairs:
                wc = wc.at[dy, dx, :, py, px, :].set(wt[:, :, ky, kx])
        return wc.reshape(9 * cin, 4 * cout).astype(ACT_DT)

    def up_w(cin, cout):
        return {'wc': conv_mat(cin, 2 * cin, 3, 3),
                'wd': deconv4_subpixel_mat(cin, cout)}

    gk = global_k
    return {
        'down1': down_w(1, 32),
        'down2': down_w(32, 64),
        'down3': down_w(64, 128),
        'down4': down_w(128, 256),
        'down5': down_w(256, 512),
        'global_w': conv_mat(1024, 512, gk, gk),           # Conv2d(512, 1024, gk)
        'deconv_wt': nrm((1024, 512, gk, gk)).astype(ACT_DT),  # ConvTranspose2d(1024,512,gk,gk)
        'up5': up_w(512, 256),
        'up4': up_w(256, 128),
        'up3': up_w(128, 64),
        'up2': up_w(64, 32),
        'up1': up_w(32, 1),
    }


if __name__ == "__main__":
    key = jax.random.PRNGKey(0)
    kp, kx, ka, kb, ks = jax.random.split(key, 5)

    # --- tiny self-check of the fused GEMM against a plain JAX reference ----
    M, K, N = 24, 20, 48
    a = jax.random.normal(ka, (M, K), jnp.float32)
    b = jax.random.normal(kb, (K, N), jnp.float32)
    sc = 1.0 + 0.1 * jax.random.normal(ks, (K,), jnp.float32)
    sh = 0.05 * jnp.arange(K, dtype=jnp.float32)
    sl = jnp.full((K,), LEAKY_SLOPE, jnp.float32)
    y, s, _ = fused_gemm(a, b, sc, sh, sl)
    ap = a.astype(ACT_DT).astype(jnp.float32) * sc + sh
    ap = jnp.where(ap >= 0, ap, LEAKY_SLOPE * ap).astype(ACT_DT).astype(jnp.float32)
    ref = jnp.dot(ap, b.astype(ACT_DT).astype(jnp.float32), precision='highest')
    assert jnp.allclose(y.astype(jnp.float32), ref, atol=0.35, rtol=0.1), "gemm mismatch"
    assert jnp.allclose(s, ref.sum(0), atol=1.0, rtol=0.1), "stats mismatch"

    # --- Hourglass forward at a small spatial size ---------------------------
    # The original module's global_conv kernel_size=16 pins the input to
    # 512x512 (bottleneck 16x16).  For a small, fast test we keep the exact
    # architecture but size the "global" conv/deconv to cover the whole
    # bottleneck of a 64x64 input (bottleneck 2x2 -> kernel 2).
    H = W = 64
    GLOBAL_K = H // 32
    params = make_params(kp, global_k=GLOBAL_K)
    x = jax.random.normal(kx, (1, 1, H, W), jnp.float32)

    fwd = jax.jit(hourglass_forward)
    up1, z = fwd(x, params)
    up1 = jax.block_until_ready(up1)
    z = jax.block_until_ready(z)

    assert up1.shape == (1, 1, H, W), up1.shape
    assert z.shape == (1, 1024, 1, 1), z.shape
    assert bool(jnp.isfinite(up1).all()) and bool(jnp.isfinite(z).all())
    print("KERNEL_OK")
</pallas_src>

<mosaic_0001>
module attributes {stable_mosaic.version = 11 : i64} {
  func.func @_fused_gemm_kernel(%arg0: i32, %arg1: i32, %arg2: i32, %arg3: memref<1x20xf32, #tpu.memory_space<vmem>>, %arg4: memref<1x20xf32, #tpu.memory_space<vmem>>, %arg5: memref<1x20xf32, #tpu.memory_space<vmem>>, %arg6: memref<32x20xbf16, #tpu.memory_space<vmem>>, %arg7: memref<20x48xbf16, #tpu.memory_space<vmem>>, %arg8: memref<32x48xbf16, #tpu.memory_space<vmem>>, %arg9: memref<1x48xf32, #tpu.memory_space<vmem>>, %arg10: memref<1x48xf32, #tpu.memory_space<vmem>>, %arg11: memref<32x48xf32, #tpu.memory_space<vmem>>) attributes {dimension_semantics = [#tpu.dimension_semantics<parallel>, #tpu.dimension_semantics<arbitrary>, #tpu.dimension_semantics<arbitrary>], iteration_bounds = array<i64: 1, 1, 1>, scalar_prefetch = 0 : i64, scratch_operands = 1 : i64, tpu.core_type = #tpu.core_type<tc>, window_params = [{transform_indices = @transform_0, window_bounds = array<i64: 1, 20>}, {transform_indices = @transform_1, window_bounds = array<i64: 1, 20>}, {transform_indices = @transform_2, window_bounds = array<i64: 1, 20>}, {transform_indices = @transform_3, window_bounds = array<i64: 32, 20>}, {transform_indices = @transform_4, window_bounds = array<i64: 20, 48>}, {transform_indices = @transform_5, window_bounds = array<i64: 32, 48>}, {transform_indices = @transform_6, window_bounds = array<i64: 1, 48>}, {transform_indices = @transform_7, window_bounds = array<i64: 1, 48>}]} {
    %c0_i32 = arith.constant 0 : i32
    %0 = arith.cmpi eq, %arg2, %c0_i32 : i32
    %1 = arith.extui %0 : i1 to i32
    %c0_i32_0 = arith.constant 0 : i32
    %2 = arith.cmpi ne, %1, %c0_i32_0 : i32
    scf.if %2 {
      %cst_20 = arith.constant 0.000000e+00 : f32
      %31 = vector.broadcast %cst_20 : f32 to vector<32x48xf32>
      %c0_21 = arith.constant 0 : index
      %c0_22 = arith.constant 0 : index
      %32 = vector.load %arg11[%c0_21, %c0_22] : memref<32x48xf32, #tpu.memory_space<vmem>>, vector<32x48xf32>
      tpu.vector_store %arg11[%c0_21, %c0_22], %31 {strides = array<i32>} : memref<32x48xf32, #tpu.memory_space<vmem>>, vector<32x48xf32>,
    } else {
    }
    %c0_i32_1 = arith.constant 0 : i32
    %3 = arith.cmpi eq, %arg1, %c0_i32_1 : i32
    %c0_i32_2 = arith.constant 0 : i32
    %4 = arith.cmpi eq, %arg2, %c0_i32_2 : i32
    %5 = arith.andi %3, %4 : i1
    %6 = arith.extui %5 : i1 to i32
    %c0_i32_3 = arith.constant 0 : i32
    %7 = arith.cmpi ne, %6, %c0_i32_3 : i32
    scf.if %7 {
      %cst_20 = arith.constant 0.000000e+00 : f32
      %31 = vector.broadcast %cst_20 : f32 to vector<1x48xf32>
      %c0_21 = arith.constant 0 : index
      %c0_22 = arith.constant 0 : index
      %32 = vector.load %arg9[%c0_21, %c0_22] : memref<1x48xf32, #tpu.memory_space<vmem>>, vector<1x48xf32>
      tpu.vector_store %arg9[%c0_21, %c0_22], %31 {strides = array<i32>} : memref<1x48xf32, #tpu.memory_space<vmem>>, vector<1x48xf32>,
      %cst_23 = arith.constant 0.000000e+00 : f32
      %33 = vector.broadcast %cst_23 : f32 to vector<1x48xf32>
      %c0_24 = arith.constant 0 : index
      %c0_25 = arith.constant 0 : index
      %34 = vector.load %arg10[%c0_24, %c0_25] : memref<1x48xf32, #tpu.memory_space<vmem>>, vector<1x48xf32>
      tpu.vector_store %arg10[%c0_24, %c0_25], %33 {strides = array<i32>} : memref<1x48xf32, #tpu.memory_space<vmem>>, vector<1x48xf32>,
    } else {
    }
    %c0 = arith.constant 0 : index
    %c0_4 = arith.constant 0 : index
    %8 = vector.load %arg6[%c0, %c0_4] : memref<32x20xbf16, #tpu.memory_space<vmem>>, vector<32x20xbf16>
    %9 = arith.extf %8 : vector<32x20xbf16> to vector<32x20xf32>
    %c0_5 = arith.constant 0 : index
    %c0_6 = arith.constant 0 : index
    %10 = vector.load %arg3[%c0_5, %c0_6] : memref<1x20xf32, #tpu.memory_space<vmem>>, vector<1x20xf32>
    %11 = vector.broadcast %10 : vector<1x20xf32> to vector<32x20xf32>
    %12 = arith.mulf %9, %11 : vector<32x20xf32>
    %c0_7 = arith.constant 0 : index
    %c0_8 = arith.constant 0 : index
    %13 = vector.load %arg4[%c0_7, %c0_8] : memref<1x20xf32, #tpu.memory_space<vmem>>, vector<1x20xf32>
    %14 = vector.broadcast %13 : vector<1x20xf32> to vector<32x20xf32>
    %15 = arith.addf %12, %14 : vector<32x20xf32>
    %cst = arith.constant 0.000000e+00 : f32
    %16 = vector.broadcast %cst : f32 to vector<32x20xf32>
    %17 = arith.cmpf oge, %15, %16 : vector<32x20xf32>
    %c0_9 = arith.constant 0 : index
    %c0_10 = arith.constant 0 : index
    %18 = vector.load %arg5[%c0_9, %c0_10] : memref<1x20xf32, #tpu.memory_space<vmem>>, vector<1x20xf32>
    %19 = vector.broadcast %18 : vector<1x20xf32> to vector<32x20xf32>
    %20 = arith.mulf %15, %19 : vector<32x20xf32>
    %21 = arith.select %17, %15, %20 : vector<32x20xi1>, vector<32x20xf32>
    %c0_11 = arith.constant 0 : index
    %c0_12 = arith.constant 0 : index
    %22 = vector.load %arg11[%c0_11, %c0_12] : memref<32x48xf32, #tpu.memory_space<vmem>>, vector<32x48xf32>
    %23 = arith.truncf %21 : vector<32x20xf32> to vector<32x20xbf16>
    %c0_13 = arith.constant 0 : index
    %c0_14 = arith.constant 0 : index
    %24 = vector.load %arg7[%c0_13, %c0_14] : memref<20x48xbf16, #tpu.memory_space<vmem>>, vector<20x48xbf16>
    %cst_15 = arith.constant dense<0.000000e+00> : vector<32x48xf32>
    %25 = tpu.matmul %23, %24, %cst_15 {dimension_numbers = #tpu.dot_dimension_numbers<[1], [0], [0], [1], [0, 0, 1, 1], [], []>} : vector<32x20xbf16>, vector<20x48xbf16>, vector<32x48xf32> -> vector<32x48xf32>
    %26 = arith.addf %22, %25 : vector<32x48xf32>
    %c0_16 = arith.constant 0 : index
    %c0_17 = arith.constant 0 : index
    %27 = vector.load %arg11[%c0_16, %c0_17] : memref<32x48xf32, #tpu.memory_space<vmem>>, vector<32x48xf32>
    tpu.vector_store %arg11[%c0_16, %c0_17], %26 {strides = array<i32>} : memref<32x48xf32, #tpu.memory_space<vmem>>, vector<32x48xf32>,
    %c0_i32_18 = arith.constant 0 : i32
    %28 = arith.cmpi eq, %arg2, %c0_i32_18 : i32
    %29 = arith.extui %28 : i1 to i32
    %c0_i32_19 = arith.constant 0 : i32
    %30 = arith.cmpi ne, %29, %c0_i32_19 : i32
    scf.if %30 {
      %c0_20 = arith.constant 0 : index
      %c0_21 = arith.constant 0 : index
      %31 = vector.load %arg11[%c0_20, %c0_21] : memref<32x48xf32, #tpu.memory_space<vmem>>, vector<32x48xf32>
      %32 = tpu.iota {dimensions = array<i32: 0>} : vector<32x48xi32>
      %c32_i32 = arith.constant 32 : i32
      %33 = arith.muli %arg1, %c32_i32 : i32
      %34 = vector.broadcast %33 : i32 to vector<32x48xi32>
      %35 = arith.addi %32, %34 : vector<32x48xi32>
      %c24_i32 = arith.constant 24 : i32
      %36 = vector.broadcast %c24_i32 : i32 to vector<32x48xi32>
      %37 = arith.cmpi slt, %35, %36 : vector<32x48xi32>
      %cst_22 = arith.constant 0.000000e+00 : f32
      %38 = vector.broadcast %cst_22 : f32 to vector<32x48xf32>
      %39 = arith.select %37, %31, %38 : vector<32x48xi1>, vector<32x48xf32>
      %c0_23 = arith.constant 0 : index
      %c0_24 = arith.constant 0 : index
      %40 = vector.load %arg9[%c0_23, %c0_24] : memref<1x48xf32, #tpu.memory_space<vmem>>, vector<1x48xf32>
      %cst_25 = arith.constant dense<0.000000e+00> : vector<48xf32>
      %41 = vector.multi_reduction <add>, %39, %cst_25 [0] : vector<32x48xf32> to vector<48xf32>
      %42 = vector.shape_cast %41 : vector<48xf32> to vector<1x48xf32>
      %43 = arith.addf %40, %42 : vector<1x48xf32>
      %c0_26 = arith.constant 0 : index
      %c0_27 = arith.constant 0 : index
      %44 = vector.load %arg9[%c0_26, %c0_27] : memref<1x48xf32, #tpu.memory_space<vmem>>, vector<1x48xf32>
      tpu.vector_store %arg9[%c0_26, %c0_27], %43 {strides = array<i32>} : memref<1x48xf32, #tpu.memory_space<vmem>>, vector<1x48xf32>,
      %c0_28 = arith.constant 0 : index
      %c0_29 = arith.constant 0 : index
      %45 = vector.load %arg10[%c0_28, %c0_29] : memref<1x48xf32, #tpu.memory_space<vmem>>, vector<1x48xf32>
      %46 = arith.mulf %39, %39 : vector<32x48xf32>
      %cst_30 = arith.constant dense<0.000000e+00> : vector<48xf32>
      %47 = vector.multi_reduction <add>, %46, %cst_30 [0] : vector<32x48xf32> to vector<48xf32>
      %48 = vector.shape_cast %47 : vector<48xf32> to vector<1x48xf32>
      %49 = arith.addf %45, %48 : vector<1x48xf32>
      %c0_31 = arith.constant 0 : index
      %c0_32 = arith.constant 0 : index
      %50 = vector.load %arg10[%c0_31, %c0_32] : memref<1x48xf32, #tpu.memory_space<vmem>>, vector<1x48xf32>
      tpu.vector_store %arg10[%c0_31, %c0_32], %49 {strides = array<i32>} : memref<1x48xf32, #tpu.memory_space<vmem>>, vector<1x48xf32>,
      %51 = arith.truncf %31 : vector<32x48xf32> to vector<32x48xbf16>
      %c0_33 = arith.constant 0 : index
      %c0_34 = arith.constant 0 : index
      %52 = vector.load %arg8[%c0_33, %c0_34] : memref<32x48xbf16, #tpu.memory_space<vmem>>, vector<32x48xbf16>
      tpu.vector_store %arg8[%c0_33, %c0_34], %51 {strides = array<i32>} : memref<32x48xbf16, #tpu.memory_space<vmem>>, vector<32x48xbf16>,
    } else {
    }
    return
  }
  func.func @transform_0(%arg0: i32, %arg1: i32, %arg2: i32) -> (i32, i32) {
    %c0_i32 = arith.constant 0 : i32
    %c0_i32_0 = arith.constant 0 : i32
    return %c0_i32, %arg2 : i32, i32
  }
  func.func @transform_1(%arg0: i32, %arg1: i32, %arg2: i32) -> (i32, i32) {
    %c0_i32 = arith.constant 0 : i32
    %c0_i32_0 = arith.constant 0 : i32
    return %c0_i32, %arg2 : i32, i32
  }
  func.func @transform_2(%arg0: i32, %arg1: i32, %arg2: i32) -> (i32, i32) {
    %c0_i32 = arith.constant 0 : i32
    %c0_i32_0 = arith.constant 0 : i32
    return %c0_i32, %arg2 : i32, i32
  }
  func.func @transform_3(%arg0: i32, %arg1: i32, %arg2: i32) -> (i32, i32) {
    %c0_i32 = arith.constant 0 : i32
    return %arg1, %arg2 : i32, i32
  }
  func.func @transform_4(%arg0: i32, %arg1: i32, %arg2: i32) -> (i32, i32) {
    %c0_i32 = arith.constant 0 : i32
    return %arg2, %arg0 : i32, i32
  }
  func.func @transform_5(%arg0: i32, %arg1: i32, %arg2: i32) -> (i32, i32) {
    %c0_i32 = arith.constant 0 : i32
    return %arg1, %arg0 : i32, i32
  }
  func.func @transform_6(%arg0: i32, %arg1: i32, %arg2: i32) -> (i32, i32) {
    %c0_i32 = arith.constant 0 : i32
    %c0_i32_0 = arith.constant 0 : i32
    return %c0_i32, %arg0 : i32, i32
  }
  func.func @transform_7(%arg0: i32, %arg1: i32, %arg2: i32) -> (i32, i32) {
    %c0_i32 = arith.constant 0 : i32
    %c0_i32_0 = arith.constant 0 : i32
    return %c0_i32, %arg0 : i32, i32
  }
}

</mosaic_0001>

<llo_original>
// kernel: tpu_custom_call.1
$region0: #{tpu_custom_call.1}
  #allocation0 [shape = 'u32[]', space=smem, size = 0x4, offset = 0x4, fixed_abs, tag = 'smem constant byte address 0x4 - core index']
  #allocation1 [shape = 'u32[72,128]{1,0:T(1,128)}', space=vmem, size = 0x9000, scoped, tag = 'internal scratch']
  #allocation2 [shape = 'f32[32,48]{1,0:T(8,128)}', space=vmem, size = 0x4000, scoped, tag = 'scratch operand']
  %s0 = inlined_call_operand.vmem [shape: f32[1,20], index: 0, kind: input, shape index: {}]
  %s1 = inlined_call_operand.vmem [shape: f32[1,20], index: 1, kind: input, shape index: {}]
  %s2 = inlined_call_operand.vmem [shape: f32[1,20], index: 2, kind: input, shape index: {}]
  %s3 = inlined_call_operand.vmem [shape: bf16[32,20], index: 3, kind: input, shape index: {}]
  %s4 = inlined_call_operand.vmem [shape: bf16[20,48], index: 4, kind: input, shape index: {}]
  %s5 = inlined_call_operand.hbm [shape: bf16[32,48], index: 5, kind: output, shape index: {0}]
  %s6 = inlined_call_operand.hbm [shape: f32[1,48], index: 6, kind: output, shape index: {1}]
  %s7 = inlined_call_operand.hbm [shape: f32[1,48], index: 7, kind: output, shape index: {2}]
  %8 = xla_tuple %s5, %s6, %s7
  %s9 = sld [smem:[#allocation0]]
  $region58: #{tpu_custom_call.1} parent=0
    _
  %s11 = ssub.s32 1, %s9
  %s12 = scalar_select 0, %s11, %s9
  $region1: #{tpu_custom_call.1} parent=0
    #allocation3 [shape = 'u8[8192]{0}', space=vmem, size = 0x2000, scoped, tag = 'output window, operand 0, single buffered']
    #allocation4 [shape = 's32[1]{0}', space=sflag, size = 0x4, scoped, tag = 'scoped memory for tpu_custom_call.1']
    #allocation5 [shape = 'u8[512]{0}', space=vmem, size = 0x400, scoped, tag = 'output window, operand 1, single buffered']
    #allocation6 [shape = 's32[1]{0}', space=sflag, size = 0x4, scoped, tag = 'scoped memory for tpu_custom_call.1']
    #allocation7 [shape = 'u8[512]{0}', space=vmem, size = 0x400, scoped, tag = 'output window, operand 2, single buffered']
    %13 = vsyncpa [#allocation4], 0
    %14 = vsyncpa [#allocation6], 0
    // Predicated region
    $region2: #{tpu_custom_call.1} parent=1 // pred_check
      _
    $region3: #{tpu_custom_call.1} parent=1 // pred_check_branch
      %16 = sbr.rel (0) target = $region5
    $region4: #{tpu_custom_call.1} parent=1 // pred_region
      _
    $region5: #{tpu_custom_call.1} parent=1 // pred_fallthru
      _
    // Predicated region
    $region6: #{tpu_custom_call.1} parent=1 // pred_check
      _
    $region7: #{tpu_custom_call.1} parent=1 // pred_check_branch
      %18 = sbr.rel (0) target = $region9
    $region8: #{tpu_custom_call.1} parent=1 // pred_region
      _
    $region9: #{tpu_custom_call.1} parent=1 // pred_fallthru
      _
    // Predicated region
    $region10: #{tpu_custom_call.1} parent=1 // pred_check
      _
    $region11: #{tpu_custom_call.1} parent=1 // pred_check_branch
      %20 = sbr.rel (0) target = $region13
    $region12: #{tpu_custom_call.1} parent=1 // pred_region
      _
    $region13: #{tpu_custom_call.1} parent=1 // pred_fallthru
      _
    // Predicated region
    $region14: #{tpu_custom_call.1} parent=1 // pred_check
      _
    $region15: #{tpu_custom_call.1} parent=1 // pred_check_branch
      %22 = sbr.rel (0) target = $region17
    $region16: #{tpu_custom_call.1} parent=1 // pred_region
      _
    $region17: #{tpu_custom_call.1} parent=1 // pred_fallthru
      _
    // Predicated region
    $region18: #{tpu_custom_call.1} parent=1 // pred_check
      _
    $region19: #{tpu_custom_call.1} parent=1 // pred_check_branch
      %24 = sbr.rel (0) target = $region21
    $region20: #{tpu_custom_call.1} parent=1 // pred_region
      _
    $region21: #{tpu_custom_call.1} parent=1 // pred_fallthru
      _
    %p26 = scmp.eq.s32.totalorder 0, 0
    // Predicated region
    $region22: #{tpu_custom_call.1} parent=1 // pred_check
      %p27 = pneg %p26
    $region23: #{tpu_custom_call.1} parent=1 // pred_check_branch
      %29 = sbr.rel (%p27) target = $region25
    $region24: #{tpu_custom_call.1} parent=1 // pred_region
      %vm30 = vcmask 392192
      %31 = vst.msk [vmem:[#allocation2] sm:$0xff] %vm30, 0.0
      %32 = vst.msk [vmem:[#allocation2 + $0x8] sm:$0xff] %vm30, 0.0
      %33 = vst.msk [vmem:[#allocation2 + $0x10] sm:$0xff] %vm30, 0.0
      %34 = vst.msk [vmem:[#allocation2 + $0x18] sm:$0xff] %vm30, 0.0
    $region25: #{tpu_custom_call.1} parent=1 // pred_fallthru
      _
    %p35 = scmp.eq.s32.totalorder 0, 0
    %p36 = pnand %p35, %p26
    %p37 = pneg %p36
    // Predicated region
    $region26: #{tpu_custom_call.1} parent=1 // pred_check
      _
    $region27: #{tpu_custom_call.1} parent=1 // pred_check_branch
      %39 = sbr.rel (%p36) target = $region29
    $region28: #{tpu_custom_call.1} parent=1 // pred_region
      %vm40 = vcmask 385024
      %41 = vst.msk [vmem:[#allocation5] sm:$0x1] %vm40, 0.0
      %42 = vst.msk [vmem:[#allocation7] sm:$0x1] %vm40, 0.0
    $region29: #{tpu_custom_call.1} parent=1 // pred_fallthru
      _
    %v43 = vld [vmem:[%s3] sm:$0xf]
    %v44 = vld [vmem:[%s3 + $0x4] sm:$0xf]
    %v45 = vld [vmem:[%s3 + $0x8] sm:$0xf]
    %v46 = vld [vmem:[%s3 + $0xc] sm:$0xf]
    %v47 = vunpack.c.l.bf16 %v43
    %v48 = vunpack.c.l.bf16 %v44
    %v49 = vunpack.c.l.bf16 %v45
    %v50 = vunpack.c.l.bf16 %v46
    %v51 = vld [vmem:[%s0] sm:$0x1]
    %v53 = vperm.slane %v51, 0
    %v55 = vmul.f32 %v47, %v53
    %v56 = vmul.f32 %v48, %v53
    %v57 = vmul.f32 %v49, %v53
    %v58 = vmul.f32 %v50, %v53
    %v59 = vld [vmem:[%s1] sm:$0x1]
    %v61 = vperm.slane %v59, 0
    %v63 = vadd.f32 %v55, %v61
    %v64 = vadd.f32 %v56, %v61
    %v65 = vadd.f32 %v57, %v61
    %v66 = vadd.f32 %v58, %v61
    %vm67 = vcmp.ge.f32.partialorder %v63, 0.0
    %vm68 = vcmp.ge.f32.partialorder %v64, 0.0
    %vm69 = vcmp.ge.f32.partialorder %v65, 0.0
    %vm70 = vcmp.ge.f32.partialorder %v66, 0.0
    %v71 = vld [vmem:[%s2] sm:$0x1]
    %v73 = vperm.slane %v71, 0
    %v75 = vmul.f32 %v63, %v73
    %v76 = vmul.f32 %v64, %v73
    %v77 = vmul.f32 %v65, %v73
    %v78 = vmul.f32 %v66, %v73
    %v79 = vsel %vm67, %v63, %v75
    %v80 = vsel %vm68, %v64, %v76
    %v81 = vsel %vm69, %v65, %v77
    %v82 = vsel %vm70, %v66, %v78
    %v83 = vld [vmem:[#allocation2] sm:$0xff]
    %v84 = vld [vmem:[#allocation2 + $0x8] sm:$0xff]
    %v85 = vld [vmem:[#allocation2 + $0x10] sm:$0xff]
    %v86 = vld [vmem:[#allocation2 + $0x18] sm:$0xff]
    %v87 = vpack.c.bf16 %v80, %v79
    %v88 = vpack.c.bf16 %v82, %v81
    %v89 = vld [vmem:[%s4] sm:$0xf]
    %v90 = vld [vmem:[%s4 + $0x4] sm:$0xf]
    %v91 = vld [vmem:[%s4 + $0x8] sm:$0x3]
    %v95 = vunpack.c.l.b16 %v89
    %v96 = vunpack.c.l.b16 %v90
    %v97 = vunpack.c.l.b16 %v91
    %v98 = vpack.c.b16 %v96, %v95
    %v99 = vpack.c.b16 %v97, %v97
    %vm101 = vcmask 162816
    %v103 = vsel %vm101, %v87, 0
    %v106 = vsel %vm101, %v88, 0
    %vm108 = vcmask 1041408
    %v110 = vsel %vm108, %v99, 0
    %112 = vmatpush.bf16.msra.mxu0 0
    %113 = vmatpush.bf16.msra.mxu0 0
    %114 = vmatpush.bf16.msra.mxu0 0
    %115 = vmatpush.bf16.msra.mxu0 0
    %116 = vmatpush.bf16.msra.mxu0 0
    %117 = vmatpush.bf16.msra.mxu0 0
    %118 = vmatpush.bf16.msra.mxu0 %v110
    %119 = vmatpush.bf16.msra.mxu0 %v98
    %120 = vmatmul.bf16.gmra.mxu0 %v103
    %v121 = vpop.f32.mrf.mxu0
    %v122 = vadd.f32 0.0, %v121
    %v123 = vpop.f32.mrf.mxu0
    %v124 = vadd.f32 0.0, %v123
    %125 = vmatmul.bf16.gmra.mxu0 %v106
    %v126 = vpop.f32.mrf.mxu0
    %v127 = vadd.f32 0.0, %v126
    %v128 = vpop.f32.mrf.mxu0
    %v129 = vadd.f32 0.0, %v128
    %130 = vdwg.mxu0
    %v131 = vadd.f32 %v83, %v122
    %v132 = vadd.f32 %v84, %v124
    %v133 = vadd.f32 %v85, %v127
    %v134 = vadd.f32 %v86, %v129
    %vm135 = vcmask 392192
    %136 = vst.msk [vmem:[#allocation2] sm:$0xff] %vm135, %v131
    %137 = vst.msk [vmem:[#allocation2 + $0x8] sm:$0xff] %vm135, %v132
    %138 = vst.msk [vmem:[#allocation2 + $0x10] sm:$0xff] %vm135, %v133
    %139 = vst.msk [vmem:[#allocation2 + $0x18] sm:$0xff] %vm135, %v134
    // Predicated region
    $region30: #{tpu_custom_call.1} parent=1 // pred_check
      %p140 = pneg %p26
    $region31: #{tpu_custom_call.1} parent=1 // pred_check_branch
      %142 = sbr.rel (%p140) target = $region33
    $region32: #{tpu_custom_call.1} parent=1 // pred_region
      %v143 = vld [vmem:[#allocation2] sm:$0xff]
      %v144 = vld [vmem:[#allocation2 + $0x8] sm:$0xff]
      %v145 = vld [vmem:[#allocation2 + $0x10] sm:$0xff]
      %v146 = vld [vmem:[#allocation2 + $0x18] sm:$0xff]
      %v147 = vlaneseq
      %v148 = vshrl.u32 %v147, 7
      %v149 = vadd.s32 %v148, 8
      %v150 = vadd.s32 %v148, 16
      %v151 = vadd.s32 %v148, 24
      %s152 = smul.u32 0, 32
      %v153 = vstv %s152
      %v154 = vadd.s32 %v148, %v153
      %v155 = vadd.s32 %v149, %v153
      %v156 = vadd.s32 %v150, %v153
      %v157 = vadd.s32 %v151, %v153
      %vm158 = vcmp.lt.s32.totalorder %v154, 24
      %vm159 = vcmp.lt.s32.totalorder %v155, 24
      %vm160 = vcmp.lt.s32.totalorder %v156, 24
      %vm161 = vcmp.lt.s32.totalorder %v157, 24
      %v162 = vsel %vm158, %v143, 0.0
      %v163 = vsel %vm159, %v144, 0.0
      %v164 = vsel %vm160, %v145, 0.0
      %v165 = vsel %vm161, %v146, 0.0
      %v166 = vld [vmem:[#allocation5] sm:$0x1]
      %v167 = vsel %vm135, %v162, 0.0
      %v168 = vsel %vm135, %v163, 0.0
      %v169 = vadd.f32 %v167, %v168
      %v170 = vsel %vm135, %v164, 0.0
      %v171 = vadd.f32 %v169, %v170
      %v172 = vsel %vm135, %v165, 0.0
      %v173 = vadd.f32 %v171, %v172
      %v174 = vrot.slane %v173, 4
      %v175 = vadd.f32 %v173, %v174
      %v176 = vrot.slane %v175, 2
      %v177 = vadd.f32 %v175, %v176
      %v178 = vrot.slane %v177, 1
      %v179 = vadd.f32 %v177, %v178
      %v180 = vadd.f32 %v166, %v179
      %vm181 = vcmask 385024
      %182 = vst.msk [vmem:[#allocation5] sm:$0x1] %vm181, %v180
      %v183 = vld [vmem:[#allocation7] sm:$0x1]
      %v184 = vmul.f32 %v162, %v162
      %v185 = vmul.f32 %v163, %v163
      %v186 = vmul.f32 %v164, %v164
      %v187 = vmul.f32 %v165, %v165
      %v188 = vsel %vm135, %v184, 0.0
      %v189 = vsel %vm135, %v185, 0.0
      %v190 = vadd.f32 %v188, %v189
      %v191 = vsel %vm135, %v186, 0.0
      %v192 = vadd.f32 %v190, %v191
      %v193 = vsel %vm135, %v187, 0.0
      %v194 = vadd.f32 %v192, %v193
      %v195 = vrot.slane %v194, 4
      %v196 = vadd.f32 %v194, %v195
      %v197 = vrot.slane %v196, 2
      %v198 = vadd.f32 %v196, %v197
      %v199 = vrot.slane %v198, 1
      %v200 = vadd.f32 %v198, %v199
      %v201 = vadd.f32 %v183, %v200
      %202 = vst.msk [vmem:[#allocation7] sm:$0x1] %vm181, %v201
      %v203 = vpack.c.bf16 %v143, %v143
      %v204 = vpack.c.bf16 %v144, %v144
      %v205 = vpack.c.bf16 %v145, %v145
      %v206 = vpack.c.bf16 %v146, %v146
      %vm207 = vcmask 388096
      %208 = vst.msk [vmem:[#allocation3] sm:$0xf] %vm207, %v203
      %209 = vst.msk [vmem:[#allocation3 + $0x4] sm:$0xf] %vm207, %v204
      %210 = vst.msk [vmem:[#allocation3 + $0x8] sm:$0xf] %vm207, %v205
      %211 = vst.msk [vmem:[#allocation3 + $0xc] sm:$0xf] %vm207, %v206
    $region33: #{tpu_custom_call.1} parent=1 // pred_fallthru
      _
    // Predicated region
    $region34: #{tpu_custom_call.1} parent=1 // pred_check
      _
    $region35: #{tpu_custom_call.1} parent=1 // pred_check_branch
      %213 = sbr.rel (0) target = $region37
    $region36: #{tpu_custom_call.1} parent=1 // pred_region
      %215 = vsyncadd [#allocation4], 0
      %s216 = sshll.u32 [#allocation3], 4
      %s217 = int_to_ptr.vmem [resolvable:$true] %s216
      %s218 = sshll.u32 %s5, 4
      %s219 = int_to_ptr.hbm [resolvable:$true] %s218
      %224 = dma.vmem_to_hbm [thread:$0]  %s217, 256, %s219, [#allocation4], 64, 64, 4
    $region37: #{tpu_custom_call.1} parent=1 // pred_fallthru
      _
    // Predicated region
    $region38: #{tpu_custom_call.1} parent=1 // pred_check
      _
    $region39: #{tpu_custom_call.1} parent=1 // pred_check_branch
      %226 = sbr.rel (0) target = $region41
    $region40: #{tpu_custom_call.1} parent=1 // pred_region
      %228 = vsyncadd [#allocation6], 0
      %s230 = sshll.u32 [#allocation5], 4
      %s231 = int_to_ptr.vmem [resolvable:$true] %s230
      %s232 = sshll.u32 %s6, 4
      %s233 = int_to_ptr.hbm [resolvable:$true] %s232
      %235 = dma.vmem_to_hbm [thread:$0]  %s231, 16, %s233, [#allocation6]
    $region41: #{tpu_custom_call.1} parent=1 // pred_fallthru
      _
    // Predicated region
    $region42: #{tpu_custom_call.1} parent=1 // pred_check
      _
    $region43: #{tpu_custom_call.1} parent=1 // pred_check_branch
      %237 = sbr.rel (0) target = $region45
    $region44: #{tpu_custom_call.1} parent=1 // pred_region
      %239 = vsyncadd [#allocation6], 0
      %s241 = sshll.u32 [#allocation7], 4
      %s242 = int_to_ptr.vmem [resolvable:$true] %s241
      %s243 = sshll.u32 %s7, 4
      %s244 = int_to_ptr.hbm [resolvable:$true] %s243
      %246 = dma.vmem_to_hbm [thread:$0]  %s242, 16, %s244, [#allocation6]
    $region45: #{tpu_custom_call.1} parent=1 // pred_fallthru
      _
    // Predicated region
    $region46: #{tpu_custom_call.1} parent=1 // pred_check
      _
    $region47: #{tpu_custom_call.1} parent=1 // pred_check_branch
      %248 = sbr.rel (0) target = $region49
    $region48: #{tpu_custom_call.1} parent=1 // pred_region
      %250 = dma.done [#allocation4], 256
    $region49: #{tpu_custom_call.1} parent=1 // pred_fallthru
      _
    // Predicated region
    $region50: #{tpu_custom_call.1} parent=1 // pred_check
      _
    $region51: #{tpu_custom_call.1} parent=1 // pred_check_branch
      %252 = sbr.rel (0) target = $region53
    $region52: #{tpu_custom_call.1} parent=1 // pred_region
      %254 = dma.done [#allocation6], 16
    $region53: #{tpu_custom_call.1} parent=1 // pred_fallthru
      _
    // Predicated region
    $region54: #{tpu_custom_call.1} parent=1 // pred_check
      _
    $region55: #{tpu_custom_call.1} parent=1 // pred_check_branch
      %256 = sbr.rel (0) target = $region57
    $region56: #{tpu_custom_call.1} parent=1 // pred_region
      %258 = dma.done [#allocation6], 16
    $region57: #{tpu_custom_call.1} parent=1 // pred_fallthru
      _
    %259 = vsyncpa [#allocation4], 1
    %260 = vsyncpa [#allocation6], 1

</llo_original>
